<compile_context>
chip_gen: v5e
topology: v5e:2x2
jax: 0.10.0
libtpu: 0.0.40
codegen_flags: <defaults>
</compile_context>

<pallas_src>
import jax
import jax.numpy as jnp
from jax import lax
from jax.experimental import pallas as pl
from jax.experimental.pallas import tpu as pltpu  # noqa: F401  (TPU backend)

# ---- module hyper-parameters (small, consistent with the PyTorch module) ----
EMBED_DIM = 32
NUM_HEADS = 4
HEAD_DIM = EMBED_DIM // NUM_HEADS
BATCH = 2
SEQ = 8


def attention_kernel(x_ref, wqkv_ref, bqkv_ref, wproj_ref, bproj_ref, o_ref):
    """Whole forward pass in one invocation.

    x_ref:     (B, N, C)
    wqkv_ref:  (C, 3C)   -- nn.Linear weight stored as (in_features, out_features)
    bqkv_ref:  (1, 3C)
    wproj_ref: (C, C)
    bproj_ref: (1, C)
    o_ref:     (B, N, C)
    """
    B, N, C = x_ref.shape
    H = NUM_HEADS
    hd = C // H
    BH = B * H
    scale = 1.0 / (hd ** 0.5)

    # ---- fused QKV projection: one (B*N, C) @ (C, 3C) matmul (1 MXU push).
    x2d = x_ref[...].reshape(B * N, C)                 # leading-dim collapse only
    qkv = jnp.dot(x2d, wqkv_ref[...], preferred_element_type=jnp.float32)
    qkv = qkv + bqkv_ref[...]                          # (B*N, 3C)

    # ---- head split with static slices (torch column index = i*C + h*hd + d).
    def split_heads(mat):                              # (B*N, C) -> (B*H, N, hd)
        parts = [mat[:, h * hd:(h + 1) * hd].reshape(B, 1, N, hd)
                 for h in range(H)]
        return jnp.concatenate(parts, axis=1).reshape(BH, N, hd)

    q = split_heads(qkv[:, 0 * C:1 * C])
    k = split_heads(qkv[:, 1 * C:2 * C])
    v = split_heads(qkv[:, 2 * C:3 * C])

    # ---- scores: contract head_dim of q and k directly (no explicit k.T),
    #      one batch axis of size B*H.
    dn_qkT = (((2,), (2,)), ((0,), (0,)))
    s = lax.dot_general(q, k, dn_qkT,
                        preferred_element_type=jnp.float32) * scale   # (BH,N,N)

    # ---- numerically-stable softmax; EUP reciprocal for the normalization.
    s = s - jnp.max(s, axis=-1, keepdims=True)
    p = jnp.exp(s)
    p = p * pl.reciprocal(jnp.sum(p, axis=-1, keepdims=True), approx=True)
    # TODO(synk): attn_drop (nn.Dropout(0.1)) is identity in eval mode; a
    # training-mode version would use pltpu.prng_seed / prng_random_bits here.

    # ---- attention output per (b, h): (BH, N, hd).
    dn_pv = (((2,), (1,)), ((0,), (0,)))
    o = lax.dot_general(p, v, dn_pv, preferred_element_type=jnp.float32)

    # ---- merge heads back to (B*N, C) (static slices + lane concat, ~512 elems).
    o4 = o.reshape(B, H, N, hd)
    o2d = jnp.concatenate([o4[:, h].reshape(B * N, hd) for h in range(H)],
                          axis=-1)                     # (B*N, C), cols = (h, d)

    # ---- fused output projection: one (B*N, C) @ (C, C) matmul + bias.
    out = jnp.dot(o2d, wproj_ref[...], preferred_element_type=jnp.float32)
    out = out + bproj_ref[...]
    o_ref[...] = out.reshape(B, N, C).astype(o_ref.dtype)


def attention_forward(x, w_qkv, b_qkv, w_proj, b_proj):
    """x: (B, N, C); linear weights stored as (in_features, out_features)."""
    B, N, C = x.shape
    # No grid: one invocation, whole arrays VMEM-resident (default full blocks).
    # Total footprint is tens of KB — far below any VMEM limit on v5e/v6e/v7x.
    return pl.pallas_call(
        attention_kernel,
        out_shape=jax.ShapeDtypeStruct((B, N, C), x.dtype),
    )(x, w_qkv, b_qkv.reshape(1, 3 * C), w_proj, b_proj.reshape(1, C))


def attention_reference(x, w_qkv, b_qkv, w_proj, b_proj):
    """Pure-JAX reference mirroring the PyTorch forward (eval mode)."""
    B, N, C = x.shape
    qkv = x @ w_qkv + b_qkv                                   # (B, N, 3C)
    qkv = qkv.reshape(B, N, 3, NUM_HEADS, HEAD_DIM)
    qkv = jnp.transpose(qkv, (2, 0, 3, 1, 4))                 # (3, B, H, N, hd)
    q, k, v = qkv[0], qkv[1], qkv[2]
    attn = jnp.einsum("bhnd,bhmd->bhnm", q, k) / (HEAD_DIM ** 0.5)
    attn = jax.nn.softmax(attn, axis=-1)
    out = jnp.einsum("bhnm,bhmd->bhnd", attn, v)              # (B, H, N, hd)
    out = jnp.transpose(out, (0, 2, 1, 3)).reshape(B, N, C)
    return out @ w_proj + b_proj


if __name__ == "__main__":
    key = jax.random.PRNGKey(0)
    k_x, k_wq, k_bq, k_wp, k_bp = jax.random.split(key, 5)

    # Deterministic synthetic parameters (shapes match the nn.Linear layers,
    # stored as (in_features, out_features)).
    x = jax.random.normal(k_x, (BATCH, SEQ, EMBED_DIM), dtype=jnp.float32)
    w_qkv = jax.random.normal(k_wq, (EMBED_DIM, 3 * EMBED_DIM), jnp.float32) * 0.1
    b_qkv = jax.random.normal(k_bq, (3 * EMBED_DIM,), jnp.float32) * 0.1
    w_proj = jax.random.normal(k_wp, (EMBED_DIM, EMBED_DIM), jnp.float32) * 0.1
    b_proj = jax.random.normal(k_bp, (EMBED_DIM,), jnp.float32) * 0.1

    out = attention_forward(x, w_qkv, b_qkv, w_proj, b_proj)
    out = jax.block_until_ready(out)

    ref = attention_reference(x, w_qkv, b_qkv, w_proj, b_proj)
    assert out.shape == (BATCH, SEQ, EMBED_DIM)
    # approx=True EUP reciprocal is a few ULPs looser than an exact divide.
    assert jnp.allclose(out, ref, atol=2e-3, rtol=2e-3), "mismatch vs reference"

    print("KERNEL_OK")
</pallas_src>

<mosaic_0001>
module attributes {stable_mosaic.version = 11 : i64} {
  func.func @attention_kernel(%arg0: memref<2x8x32xf32, #tpu.memory_space<vmem>>, %arg1: memref<32x96xf32, #tpu.memory_space<vmem>>, %arg2: memref<1x96xf32, #tpu.memory_space<vmem>>, %arg3: memref<32x32xf32, #tpu.memory_space<vmem>>, %arg4: memref<1x32xf32, #tpu.memory_space<vmem>>, %arg5: memref<2x8x32xf32, #tpu.memory_space<vmem>>) attributes {dimension_semantics = [], scalar_prefetch = 0 : i64, scratch_operands = 0 : i64, tpu.core_type = #tpu.core_type<tc>} {
    %c0 = arith.constant 0 : index
    %c0_0 = arith.constant 0 : index
    %c0_1 = arith.constant 0 : index
    %0 = vector.load %arg0[%c0, %c0_0, %c0_1] : memref<2x8x32xf32, #tpu.memory_space<vmem>>, vector<2x8x32xf32>
    %1 = vector.shape_cast %0 : vector<2x8x32xf32> to vector<16x32xf32>
    %c0_2 = arith.constant 0 : index
    %c0_3 = arith.constant 0 : index
    %2 = vector.load %arg1[%c0_2, %c0_3] : memref<32x96xf32, #tpu.memory_space<vmem>>, vector<32x96xf32>
    %cst = arith.constant dense<0.000000e+00> : vector<16x96xf32>
    %3 = tpu.matmul %1, %2, %cst {dimension_numbers = #tpu.dot_dimension_numbers<[1], [0], [0], [1], [0, 0, 1, 1], [], []>} : vector<16x32xf32>, vector<32x96xf32>, vector<16x96xf32> -> vector<16x96xf32>
    %c0_4 = arith.constant 0 : index
    %c0_5 = arith.constant 0 : index
    %4 = vector.load %arg2[%c0_4, %c0_5] : memref<1x96xf32, #tpu.memory_space<vmem>>, vector<1x96xf32>
    %5 = vector.broadcast %4 : vector<1x96xf32> to vector<16x96xf32>
    %6 = arith.addf %3, %5 : vector<16x96xf32>
    %7 = vector.extract_strided_slice %6 {offsets = [0, 0], sizes = [16, 32], strides = [1, 1]} : vector<16x96xf32> to vector<16x32xf32>
    %8 = vector.extract_strided_slice %7 {offsets = [0, 0], sizes = [16, 8], strides = [1, 1]} : vector<16x32xf32> to vector<16x8xf32>
    %9 = vector.shape_cast %8 : vector<16x8xf32> to vector<2x1x8x8xf32>
    %10 = vector.extract_strided_slice %7 {offsets = [0, 8], sizes = [16, 8], strides = [1, 1]} : vector<16x32xf32> to vector<16x8xf32>
    %11 = vector.shape_cast %10 : vector<16x8xf32> to vector<2x1x8x8xf32>
    %12 = vector.extract_strided_slice %7 {offsets = [0, 16], sizes = [16, 8], strides = [1, 1]} : vector<16x32xf32> to vector<16x8xf32>
    %13 = vector.shape_cast %12 : vector<16x8xf32> to vector<2x1x8x8xf32>
    %14 = vector.extract_strided_slice %7 {offsets = [0, 24], sizes = [16, 8], strides = [1, 1]} : vector<16x32xf32> to vector<16x8xf32>
    %15 = vector.shape_cast %14 : vector<16x8xf32> to vector<2x1x8x8xf32>
    %16 = tpu.concatenate %9, %11, %13, %15 in 1 : vector<2x1x8x8xf32>, vector<2x1x8x8xf32>, vector<2x1x8x8xf32>, vector<2x1x8x8xf32> -> vector<2x4x8x8xf32>
    %17 = vector.shape_cast %16 : vector<2x4x8x8xf32> to vector<8x8x8xf32>
    %18 = vector.extract_strided_slice %6 {offsets = [0, 32], sizes = [16, 32], strides = [1, 1]} : vector<16x96xf32> to vector<16x32xf32>
    %19 = vector.extract_strided_slice %18 {offsets = [0, 0], sizes = [16, 8], strides = [1, 1]} : vector<16x32xf32> to vector<16x8xf32>
    %20 = vector.shape_cast %19 : vector<16x8xf32> to vector<2x1x8x8xf32>
    %21 = vector.extract_strided_slice %18 {offsets = [0, 8], sizes = [16, 8], strides = [1, 1]} : vector<16x32xf32> to vector<16x8xf32>
    %22 = vector.shape_cast %21 : vector<16x8xf32> to vector<2x1x8x8xf32>
    %23 = vector.extract_strided_slice %18 {offsets = [0, 16], sizes = [16, 8], strides = [1, 1]} : vector<16x32xf32> to vector<16x8xf32>
    %24 = vector.shape_cast %23 : vector<16x8xf32> to vector<2x1x8x8xf32>
    %25 = vector.extract_strided_slice %18 {offsets = [0, 24], sizes = [16, 8], strides = [1, 1]} : vector<16x32xf32> to vector<16x8xf32>
    %26 = vector.shape_cast %25 : vector<16x8xf32> to vector<2x1x8x8xf32>
    %27 = tpu.concatenate %20, %22, %24, %26 in 1 : vector<2x1x8x8xf32>, vector<2x1x8x8xf32>, vector<2x1x8x8xf32>, vector<2x1x8x8xf32> -> vector<2x4x8x8xf32>
    %28 = vector.shape_cast %27 : vector<2x4x8x8xf32> to vector<8x8x8xf32>
    %29 = vector.extract_strided_slice %6 {offsets = [0, 64], sizes = [16, 32], strides = [1, 1]} : vector<16x96xf32> to vector<16x32xf32>
    %30 = vector.extract_strided_slice %29 {offsets = [0, 0], sizes = [16, 8], strides = [1, 1]} : vector<16x32xf32> to vector<16x8xf32>
    %31 = vector.shape_cast %30 : vector<16x8xf32> to vector<2x1x8x8xf32>
    %32 = vector.extract_strided_slice %29 {offsets = [0, 8], sizes = [16, 8], strides = [1, 1]} : vector<16x32xf32> to vector<16x8xf32>
    %33 = vector.shape_cast %32 : vector<16x8xf32> to vector<2x1x8x8xf32>
    %34 = vector.extract_strided_slice %29 {offsets = [0, 16], sizes = [16, 8], strides = [1, 1]} : vector<16x32xf32> to vector<16x8xf32>
    %35 = vector.shape_cast %34 : vector<16x8xf32> to vector<2x1x8x8xf32>
    %36 = vector.extract_strided_slice %29 {offsets = [0, 24], sizes = [16, 8], strides = [1, 1]} : vector<16x32xf32> to vector<16x8xf32>
    %37 = vector.shape_cast %36 : vector<16x8xf32> to vector<2x1x8x8xf32>
    %38 = tpu.concatenate %31, %33, %35, %37 in 1 : vector<2x1x8x8xf32>, vector<2x1x8x8xf32>, vector<2x1x8x8xf32>, vector<2x1x8x8xf32> -> vector<2x4x8x8xf32>
    %39 = vector.shape_cast %38 : vector<2x4x8x8xf32> to vector<8x8x8xf32>
    %cst_6 = arith.constant dense<0.000000e+00> : vector<8x8x8xf32>
    %40 = tpu.matmul %17, %28, %cst_6 {dimension_numbers = #tpu.dot_dimension_numbers<[2], [2], [1], [1], [0, 0, 0, 1, 1, 1], [0], [0]>} : vector<8x8x8xf32>, vector<8x8x8xf32>, vector<8x8x8xf32> -> vector<8x8x8xf32>
    %cst_7 = arith.constant 0.353553385 : f32
    %41 = vector.broadcast %cst_7 : f32 to vector<8x8x8xf32>
    %42 = arith.mulf %40, %41 : vector<8x8x8xf32>
    %cst_8 = arith.constant dense<0xFF800000> : vector<8x8xf32>
    %43 = vector.multi_reduction <maximumf>, %42, %cst_8 [2] : vector<8x8x8xf32> to vector<8x8xf32>
    %44 = vector.shape_cast %43 : vector<8x8xf32> to vector<8x8x1xf32>
    %45 = vector.broadcast %44 : vector<8x8x1xf32> to vector<8x8x8xf32>
    %46 = arith.subf %42, %45 : vector<8x8x8xf32>
    %47 = math.exp %46 : vector<8x8x8xf32>
    %cst_9 = arith.constant dense<0.000000e+00> : vector<8x8xf32>
    %48 = vector.multi_reduction <add>, %47, %cst_9 [2] : vector<8x8x8xf32> to vector<8x8xf32>
    %49 = vector.shape_cast %48 : vector<8x8xf32> to vector<8x8x1xf32>
    %50 = tpu.reciprocal %49 {approx = true} : vector<8x8x1xf32> -> vector<8x8x1xf32>
    %51 = vector.broadcast %50 : vector<8x8x1xf32> to vector<8x8x8xf32>
    %52 = arith.mulf %47, %51 : vector<8x8x8xf32>
    %cst_10 = arith.constant dense<0.000000e+00> : vector<8x8x8xf32>
    %53 = tpu.matmul %52, %39, %cst_10 {dimension_numbers = #tpu.dot_dimension_numbers<[2], [1], [1], [2], [0, 0, 0, 1, 1, 2], [0], [0]>} : vector<8x8x8xf32>, vector<8x8x8xf32>, vector<8x8x8xf32> -> vector<8x8x8xf32>
    %54 = vector.shape_cast %53 : vector<8x8x8xf32> to vector<2x4x8x8xf32>
    %55 = vector.extract_strided_slice %54 {offsets = [0, 0, 0, 0], sizes = [2, 1, 8, 8], strides = [1, 1, 1, 1]} : vector<2x4x8x8xf32> to vector<2x1x8x8xf32>
    %56 = vector.shape_cast %55 : vector<2x1x8x8xf32> to vector<2x8x8xf32>
    %57 = vector.shape_cast %56 : vector<2x8x8xf32> to vector<16x8xf32>
    %58 = vector.extract_strided_slice %54 {offsets = [0, 1, 0, 0], sizes = [2, 1, 8, 8], strides = [1, 1, 1, 1]} : vector<2x4x8x8xf32> to vector<2x1x8x8xf32>
    %59 = vector.shape_cast %58 : vector<2x1x8x8xf32> to vector<2x8x8xf32>
    %60 = vector.shape_cast %59 : vector<2x8x8xf32> to vector<16x8xf32>
    %61 = vector.extract_strided_slice %54 {offsets = [0, 2, 0, 0], sizes = [2, 1, 8, 8], strides = [1, 1, 1, 1]} : vector<2x4x8x8xf32> to vector<2x1x8x8xf32>
    %62 = vector.shape_cast %61 : vector<2x1x8x8xf32> to vector<2x8x8xf32>
    %63 = vector.shape_cast %62 : vector<2x8x8xf32> to vector<16x8xf32>
    %64 = vector.extract_strided_slice %54 {offsets = [0, 3, 0, 0], sizes = [2, 1, 8, 8], strides = [1, 1, 1, 1]} : vector<2x4x8x8xf32> to vector<2x1x8x8xf32>
    %65 = vector.shape_cast %64 : vector<2x1x8x8xf32> to vector<2x8x8xf32>
    %66 = vector.shape_cast %65 : vector<2x8x8xf32> to vector<16x8xf32>
    %67 = tpu.concatenate %57, %60, %63, %66 in 1 : vector<16x8xf32>, vector<16x8xf32>, vector<16x8xf32>, vector<16x8xf32> -> vector<16x32xf32>
    %c0_11 = arith.constant 0 : index
    %c0_12 = arith.constant 0 : index
    %68 = vector.load %arg3[%c0_11, %c0_12] : memref<32x32xf32, #tpu.memory_space<vmem>>, vector<32x32xf32>
    %cst_13 = arith.constant dense<0.000000e+00> : vector<16x32xf32>
    %69 = tpu.matmul %67, %68, %cst_13 {dimension_numbers = #tpu.dot_dimension_numbers<[1], [0], [0], [1], [0, 0, 1, 1], [], []>} : vector<16x32xf32>, vector<32x32xf32>, vector<16x32xf32> -> vector<16x32xf32>
    %c0_14 = arith.constant 0 : index
    %c0_15 = arith.constant 0 : index
    %70 = vector.load %arg4[%c0_14, %c0_15] : memref<1x32xf32, #tpu.memory_space<vmem>>, vector<1x32xf32>
    %71 = vector.broadcast %70 : vector<1x32xf32> to vector<16x32xf32>
    %72 = arith.addf %69, %71 : vector<16x32xf32>
    %73 = vector.shape_cast %72 : vector<16x32xf32> to vector<2x8x32xf32>
    %c0_16 = arith.constant 0 : index
    %c0_17 = arith.constant 0 : index
    %c0_18 = arith.constant 0 : index
    %74 = vector.load %arg5[%c0_16, %c0_17, %c0_18] : memref<2x8x32xf32, #tpu.memory_space<vmem>>, vector<2x8x32xf32>
    tpu.vector_store %arg5[%c0_16, %c0_17, %c0_18], %73 {strides = array<i32>} : memref<2x8x32xf32, #tpu.memory_space<vmem>>, vector<2x8x32xf32>,
    return
  }
}

</mosaic_0001>

<llo_original>
// kernel: tpu_custom_call.1
$region0: #{tpu_custom_call.1}
  #allocation0 [shape = 'u32[]', space=smem, size = 0x4, offset = 0x4, fixed_abs, tag = 'smem constant byte address 0x4 - core index']
  #allocation1 [shape = 'u32[72,128]{1,0:T(1,128)}', space=vmem, size = 0x9000, scoped, tag = 'internal scratch']
  %s0 = inlined_call_operand.hbm [shape: f32[2,8,32], index: 0, kind: input, shape index: {}]
  %s1 = inlined_call_operand.hbm [shape: f32[32,96], index: 1, kind: input, shape index: {}]
  %s2 = inlined_call_operand.vmem [shape: f32[1,96], index: 2, kind: input, shape index: {}]
  %s3 = inlined_call_operand.hbm [shape: f32[32,32], index: 3, kind: input, shape index: {}]
  %s4 = inlined_call_operand.vmem [shape: f32[1,32], index: 4, kind: input, shape index: {}]
  %s5 = inlined_call_operand.hbm [shape: f32[2,8,32], index: 5, kind: output, shape index: {}]
  %s6 = sld [smem:[#allocation0]]
  $region42: #{tpu_custom_call.1} parent=0
    _
  %s8 = ssub.s32 1, %s6
  %s9 = scalar_select 0, %s8, %s6
  $region1: #{tpu_custom_call.1} parent=0
    #allocation2 [shape = 'u8[8192]{0}', space=vmem, size = 0x2000, scoped, tag = 'input window, operand 0, single buffered']
    #allocation3 [shape = 's32[1]{0}', space=sflag, size = 0x4, scoped, tag = 'scoped memory for tpu_custom_call.1']
    #allocation4 [shape = 's32[1]{0}', space=sflag, size = 0x4, scoped, tag = 'scoped memory for tpu_custom_call.1']
    #allocation5 [shape = 'u8[16384]{0}', space=vmem, size = 0x4000, scoped, tag = 'input window, operand 1, single buffered']
    #allocation6 [shape = 's32[1]{0}', space=sflag, size = 0x4, scoped, tag = 'scoped memory for tpu_custom_call.1']
    #allocation7 [shape = 'u8[16384]{0}', space=vmem, size = 0x4000, scoped, tag = 'input window, operand 3, single buffered']
    #allocation8 [shape = 'u8[8192]{0}', space=vmem, size = 0x2000, scoped, tag = 'output window, operand 0, single buffered']
    %10 = vsyncpa [#allocation3], 0
    %11 = vsyncpa [#allocation6], 0
    %12 = vsyncpa [#allocation4], 0
    // Predicated region
    $region2: #{tpu_custom_call.1} parent=1 // pred_check
      _
    $region3: #{tpu_custom_call.1} parent=1 // pred_check_branch
      %14 = sbr.rel (0) target = $region5
    $region4: #{tpu_custom_call.1} parent=1 // pred_region
      %16 = vsyncadd [#allocation3], 0
      %s17 = sshll.u32 %s0, 4
      %s18 = int_to_ptr.hbm [resolvable:$true] %s17
      %s19 = sshll.u32 [#allocation2], 4
      %s20 = int_to_ptr.vmem [resolvable:$true] %s19
      %25 = dma.hbm_to_vmem [thread:$0]  %s18, 256, %s20, [#allocation3], 128, 128, 8
    $region5: #{tpu_custom_call.1} parent=1 // pred_fallthru
      _
    // Predicated region
    $region6: #{tpu_custom_call.1} parent=1 // pred_check
      _
    $region7: #{tpu_custom_call.1} parent=1 // pred_check_branch
      %27 = sbr.rel (0) target = $region9
    $region8: #{tpu_custom_call.1} parent=1 // pred_region
      %29 = vsyncadd [#allocation6], 0
      %s30 = sshll.u32 %s1, 4
      %s31 = int_to_ptr.hbm [resolvable:$true] %s30
      %s32 = sshll.u32 [#allocation5], 4
      %s33 = int_to_ptr.vmem [resolvable:$true] %s32
      %38 = dma.hbm_to_vmem [thread:$0]  %s31, 512, %s33, [#allocation6], 128, 128, 8
    $region9: #{tpu_custom_call.1} parent=1 // pred_fallthru
      _
    // Predicated region
    $region10: #{tpu_custom_call.1} parent=1 // pred_check
      _
    $region11: #{tpu_custom_call.1} parent=1 // pred_check_branch
      %40 = sbr.rel (0) target = $region13
    $region12: #{tpu_custom_call.1} parent=1 // pred_region
      _
    $region13: #{tpu_custom_call.1} parent=1 // pred_fallthru
      _
    // Predicated region
    $region14: #{tpu_custom_call.1} parent=1 // pred_check
      _
    $region15: #{tpu_custom_call.1} parent=1 // pred_check_branch
      %42 = sbr.rel (0) target = $region17
    $region16: #{tpu_custom_call.1} parent=1 // pred_region
      %44 = vsyncadd [#allocation6], 0
      %s45 = sshll.u32 %s3, 4
      %s46 = int_to_ptr.hbm [resolvable:$true] %s45
      %s47 = sshll.u32 [#allocation7], 4
      %s48 = int_to_ptr.vmem [resolvable:$true] %s47
      %53 = dma.hbm_to_vmem [thread:$0]  %s46, 512, %s48, [#allocation6], 128, 128, 8
    $region17: #{tpu_custom_call.1} parent=1 // pred_fallthru
      _
    // Predicated region
    $region18: #{tpu_custom_call.1} parent=1 // pred_check
      _
    $region19: #{tpu_custom_call.1} parent=1 // pred_check_branch
      %55 = sbr.rel (0) target = $region21
    $region20: #{tpu_custom_call.1} parent=1 // pred_region
      _
    $region21: #{tpu_custom_call.1} parent=1 // pred_fallthru
      _
    // Predicated region
    $region22: #{tpu_custom_call.1} parent=1 // pred_check
      _
    $region23: #{tpu_custom_call.1} parent=1 // pred_check_branch
      %57 = sbr.rel (0) target = $region25
    $region24: #{tpu_custom_call.1} parent=1 // pred_region
      %59 = dma.done [#allocation3], 256
    $region25: #{tpu_custom_call.1} parent=1 // pred_fallthru
      _
    // Predicated region
    $region26: #{tpu_custom_call.1} parent=1 // pred_check
      _
    $region27: #{tpu_custom_call.1} parent=1 // pred_check_branch
      %61 = sbr.rel (0) target = $region29
    $region28: #{tpu_custom_call.1} parent=1 // pred_region
      %63 = dma.done [#allocation6], 512
    $region29: #{tpu_custom_call.1} parent=1 // pred_fallthru
      _
    // Predicated region
    $region30: #{tpu_custom_call.1} parent=1 // pred_check
      _
    $region31: #{tpu_custom_call.1} parent=1 // pred_check_branch
      %65 = sbr.rel (0) target = $region33
    $region32: #{tpu_custom_call.1} parent=1 // pred_region
      %67 = dma.done [#allocation6], 512
    $region33: #{tpu_custom_call.1} parent=1 // pred_fallthru
      _
    %v68 = vld [vmem:[#allocation2] sm:$0xff]
    %v69 = vld [vmem:[#allocation2 + $0x8] sm:$0xff]
    %v70 = vld [vmem:[#allocation5] sm:$0xff]
    %v71 = vld [vmem:[#allocation5 + $0x8] sm:$0xff]
    %v72 = vld [vmem:[#allocation5 + $0x10] sm:$0xff]
    %v73 = vld [vmem:[#allocation5 + $0x18] sm:$0xff]
    %v74 = vld [vmem:[%s2] sm:$0x1]
    %v76 = vperm.slane %v74, 0
    %vm78 = vcmask 261120
    %v80 = vsel %vm78, %v68, 0
    %v83 = vsel %vm78, %v69, 0
    %85 = vmatpush.msra.mxu0 0.0
    %86 = vmatpush.msra.mxu0 0.0
    %87 = vmatpush.msra.mxu0 0.0
    %88 = vmatpush.msra.mxu0 0.0
    %89 = vmatpush.msra.mxu0 0.0
    %90 = vmatpush.msra.mxu0 0.0
    %91 = vmatpush.msra.mxu0 0.0
    %92 = vmatpush.msra.mxu0 0.0
    %93 = vmatpush.msra.mxu0 0.0
    %94 = vmatpush.msra.mxu0 0.0
    %95 = vmatpush.msra.mxu0 0.0
    %96 = vmatpush.msra.mxu0 0.0
    %97 = vmatpush.msra.mxu0 %v73
    %98 = vmatpush.msra.mxu0 %v72
    %99 = vmatpush.msra.mxu0 %v71
    %100 = vmatpush.msra.mxu0 %v70
    %101 = vmatmul.f32.gmra.mxu0 %v80
    %v102 = vpop.f32.mrf.mxu0
    %v103 = vadd.f32 %v76, %v102
    %104 = vmatmul.f32.gmra.mxu0 %v83
    %v105 = vpop.f32.mrf.mxu0
    %v106 = vadd.f32 %v76, %v105
    %107 = vdwg.mxu0
    %110 = vrot.lane.b32.xlu0 %v103, 120
    %v111 = vpop.permute.xlu0 %110
    %112 = vrot.lane.b32.xlu0 %v106, 120
    %v113 = vpop.permute.xlu0 %112
    %114 = vrot.lane.b32.xlu0 %v103, 112
    %v115 = vpop.permute.xlu0 %114
    %116 = vrot.lane.b32.xlu0 %v106, 112
    %v117 = vpop.permute.xlu0 %116
    %118 = vrot.lane.b32.xlu0 %v103, 104
    %v119 = vpop.permute.xlu0 %118
    %120 = vrot.lane.b32.xlu0 %v106, 104
    %v121 = vpop.permute.xlu0 %120
    %122 = vrot.lane.b32.xlu0 %v103, 96
    %v123 = vpop.permute.xlu0 %122
    %vm124 = vcmask 64512
    %v125 = vsel %vm124, %v103, 0
    %v127 = vsel %vm124, %v123, 0
    %129 = vmatpush.xpose.msra.mxu0 0.0
    %130 = vmatpush.xpose.msra.mxu0 0.0
    %131 = vmatpush.xpose.msra.mxu0 0.0
    %132 = vmatpush.xpose.msra.mxu0 0.0
    %133 = vmatpush.xpose.msra.mxu0 0.0
    %134 = vmatpush.xpose.msra.mxu0 0.0
    %135 = vmatpush.xpose.msra.mxu0 0.0
    %136 = vmatpush.xpose.msra.mxu0 0.0
    %137 = vmatpush.xpose.msra.mxu0 0.0
    %138 = vmatpush.xpose.msra.mxu0 0.0
    %139 = vmatpush.xpose.msra.mxu0 0.0
    %140 = vmatpush.xpose.msra.mxu0 0.0
    %141 = vmatpush.xpose.msra.mxu0 0.0
    %142 = vmatpush.xpose.msra.mxu0 0.0
    %143 = vmatpush.xpose.msra.mxu0 0.0
    %144 = vmatpush.xpose.msra.mxu0 %v127
    %145 = vmatmul.f32.gmra.mxu0 %v125
    %v146 = vpop.f32.mrf.mxu0
    %v147 = vadd.f32 0.0, %v146
    %148 = vdwg.mxu0
    %149 = vrot.lane.b32.xlu0 %v111, 96
    %v150 = vpop.permute.xlu0 %149
    %v151 = vsel %vm124, %v111, 0
    %v153 = vsel %vm124, %v150, 0
    %155 = vmatpush.xpose.msra.mxu0 0.0
    %156 = vmatpush.xpose.msra.mxu0 0.0
    %157 = vmatpush.xpose.msra.mxu0 0.0
    %158 = vmatpush.xpose.msra.mxu0 0.0
    %159 = vmatpush.xpose.msra.mxu0 0.0
    %160 = vmatpush.xpose.msra.mxu0 0.0
    %161 = vmatpush.xpose.msra.mxu0 0.0
    %162 = vmatpush.xpose.msra.mxu0 0.0
    %163 = vmatpush.xpose.msra.mxu0 0.0
    %164 = vmatpush.xpose.msra.mxu0 0.0
    %165 = vmatpush.xpose.msra.mxu0 0.0
    %166 = vmatpush.xpose.msra.mxu0 0.0
    %167 = vmatpush.xpose.msra.mxu0 0.0
    %168 = vmatpush.xpose.msra.mxu0 0.0
    %169 = vmatpush.xpose.msra.mxu0 0.0
    %170 = vmatpush.xpose.msra.mxu0 %v153
    %171 = vmatmul.f32.gmra.mxu0 %v151
    %v172 = vpop.f32.mrf.mxu0
    %v173 = vadd.f32 0.0, %v172
    %174 = vdwg.mxu0
    %175 = vrot.lane.b32.xlu0 %v115, 96
    %v176 = vpop.permute.xlu0 %175
    %v177 = vsel %vm124, %v115, 0
    %v179 = vsel %vm124, %v176, 0
    %181 = vmatpush.xpose.msra.mxu0 0.0
    %182 = vmatpush.xpose.msra.mxu0 0.0
    %183 = vmatpush.xpose.msra.mxu0 0.0
    %184 = vmatpush.xpose.msra.mxu0 0.0
    %185 = vmatpush.xpose.msra.mxu0 0.0
    %186 = vmatpush.xpose.msra.mxu0 0.0
    %187 = vmatpush.xpose.msra.mxu0 0.0
    %188 = vmatpush.xpose.msra.mxu0 0.0
    %189 = vmatpush.xpose.msra.mxu0 0.0
    %190 = vmatpush.xpose.msra.mxu0 0.0
    %191 = vmatpush.xpose.msra.mxu0 0.0
    %192 = vmatpush.xpose.msra.mxu0 0.0
    %193 = vmatpush.xpose.msra.mxu0 0.0
    %194 = vmatpush.xpose.msra.mxu0 0.0
    %195 = vmatpush.xpose.msra.mxu0 0.0
    %196 = vmatpush.xpose.msra.mxu0 %v179
    %197 = vmatmul.f32.gmra.mxu0 %v177
    %v198 = vpop.f32.mrf.mxu0
    %v199 = vadd.f32 0.0, %v198
    %200 = vdwg.mxu0
    %201 = vrot.lane.b32.xlu0 %v119, 96
    %v202 = vpop.permute.xlu0 %201
    %v203 = vsel %vm124, %v119, 0
    %v205 = vsel %vm124, %v202, 0
    %207 = vmatpush.xpose.msra.mxu0 0.0
    %208 = vmatpush.xpose.msra.mxu0 0.0
    %209 = vmatpush.xpose.msra.mxu0 0.0
    %210 = vmatpush.xpose.msra.mxu0 0.0
    %211 = vmatpush.xpose.msra.mxu0 0.0
    %212 = vmatpush.xpose.msra.mxu0 0.0
    %213 = vmatpush.xpose.msra.mxu0 0.0
    %214 = vmatpush.xpose.msra.mxu0 0.0
    %215 = vmatpush.xpose.msra.mxu0 0.0
    %216 = vmatpush.xpose.msra.mxu0 0.0
    %217 = vmatpush.xpose.msra.mxu0 0.0
    %218 = vmatpush.xpose.msra.mxu0 0.0
    %219 = vmatpush.xpose.msra.mxu0 0.0
    %220 = vmatpush.xpose.msra.mxu0 0.0
    %221 = vmatpush.xpose.msra.mxu0 0.0
    %222 = vmatpush.xpose.msra.mxu0 %v205
    %223 = vmatmul.f32.gmra.mxu0 %v203
    %v224 = vpop.f32.mrf.mxu0
    %v225 = vadd.f32 0.0, %v224
    %226 = vdwg.mxu0
    %227 = vrot.lane.b32.xlu0 %v106, 96
    %v228 = vpop.permute.xlu0 %227
    %v229 = vsel %vm124, %v106, 0
    %v231 = vsel %vm124, %v228, 0
    %233 = vmatpush.xpose.msra.mxu0 0.0
    %234 = vmatpush.xpose.msra.mxu0 0.0
    %235 = vmatpush.xpose.msra.mxu0 0.0
    %236 = vmatpush.xpose.msra.mxu0 0.0
    %237 = vmatpush.xpose.msra.mxu0 0.0
    %238 = vmatpush.xpose.msra.mxu0 0.0
    %239 = vmatpush.xpose.msra.mxu0 0.0
    %240 = vmatpush.xpose.msra.mxu0 0.0
    %241 = vmatpush.xpose.msra.mxu0 0.0
    %242 = vmatpush.xpose.msra.mxu0 0.0
    %243 = vmatpush.xpose.msra.mxu0 0.0
    %244 = vmatpush.xpose.msra.mxu0 0.0
    %245 = vmatpush.xpose.msra.mxu0 0.0
    %246 = vmatpush.xpose.msra.mxu0 0.0
    %247 = vmatpush.xpose.msra.mxu0 0.0
    %248 = vmatpush.xpose.msra.mxu0 %v231
    %249 = vmatmul.f32.gmra.mxu0 %v229
    %v250 = vpop.f32.mrf.mxu0
    %v251 = vadd.f32 0.0, %v250
    %252 = vdwg.mxu0
    %253 = vrot.lane.b32.xlu0 %v113, 96
    %v254 = vpop.permute.xlu0 %253
    %v255 = vsel %vm124, %v113, 0
    %v257 = vsel %vm124, %v254, 0
    %259 = vmatpush.xpose.msra.mxu0 0.0
    %260 = vmatpush.xpose.msra.mxu0 0.0
    %261 = vmatpush.xpose.msra.mxu0 0.0
    %262 = vmatpush.xpose.msra.mxu0 0.0
    %263 = vmatpush.xpose.msra.mxu0 0.0
    %264 = vmatpush.xpose.msra.mxu0 0.0
    %265 = vmatpush.xpose.msra.mxu0 0.0
    %266 = vmatpush.xpose.msra.mxu0 0.0
    %267 = vmatpush.xpose.msra.mxu0 0.0
    %268 = vmatpush.xpose.msra.mxu0 0.0
    %269 = vmatpush.xpose.msra.mxu0 0.0
    %270 = vmatpush.xpose.msra.mxu0 0.0
    %271 = vmatpush.xpose.msra.mxu0 0.0
    %272 = vmatpush.xpose.msra.mxu0 0.0
    %273 = vmatpush.xpose.msra.mxu0 0.0
    %274 = vmatpush.xpose.msra.mxu0 %v257
    %275 = vmatmul.f32.gmra.mxu0 %v255
    %v276 = vpop.f32.mrf.mxu0
    %v277 = vadd.f32 0.0, %v276
    %278 = vdwg.mxu0
    %279 = vrot.lane.b32.xlu0 %v117, 96
    %v280 = vpop.permute.xlu0 %279
    %v281 = vsel %vm124, %v117, 0
    %v283 = vsel %vm124, %v280, 0
    %285 = vmatpush.xpose.msra.mxu0 0.0
    %286 = vmatpush.xpose.msra.mxu0 0.0
    %287 = vmatpush.xpose.msra.mxu0 0.0
    %288 = vmatpush.xpose.msra.mxu0 0.0
    %289 = vmatpush.xpose.msra.mxu0 0.0
    %290 = vmatpush.xpose.msra.mxu0 0.0
    %291 = vmatpush.xpose.msra.mxu0 0.0
    %292 = vmatpush.xpose.msra.mxu0 0.0
    %293 = vmatpush.xpose.msra.mxu0 0.0
    %294 = vmatpush.xpose.msra.mxu0 0.0
    %295 = vmatpush.xpose.msra.mxu0 0.0
    %296 = vmatpush.xpose.msra.mxu0 0.0
    %297 = vmatpush.xpose.msra.mxu0 0.0
    %298 = vmatpush.xpose.msra.mxu0 0.0
    %299 = vmatpush.xpose.msra.mxu0 0.0
    %300 = vmatpush.xpose.msra.mxu0 %v283
    %301 = vmatmul.f32.gmra.mxu0 %v281
    %v302 = vpop.f32.mrf.mxu0
    %v303 = vadd.f32 0.0, %v302
    %304 = vdwg.mxu0
    %305 = vrot.lane.b32.xlu0 %v121, 96
    %v306 = vpop.permute.xlu0 %305
    %v307 = vsel %vm124, %v121, 0
    %v309 = vsel %vm124, %v306, 0
    %311 = vmatpush.xpose.msra.mxu0 0.0
    %312 = vmatpush.xpose.msra.mxu0 0.0
    %313 = vmatpush.xpose.msra.mxu0 0.0
    %314 = vmatpush.xpose.msra.mxu0 0.0
    %315 = vmatpush.xpose.msra.mxu0 0.0
    %316 = vmatpush.xpose.msra.mxu0 0.0
    %317 = vmatpush.xpose.msra.mxu0 0.0
    %318 = vmatpush.xpose.msra.mxu0 0.0
    %319 = vmatpush.xpose.msra.mxu0 0.0
    %320 = vmatpush.xpose.msra.mxu0 0.0
    %321 = vmatpush.xpose.msra.mxu0 0.0
    %322 = vmatpush.xpose.msra.mxu0 0.0
    %323 = vmatpush.xpose.msra.mxu0 0.0
    %324 = vmatpush.xpose.msra.mxu0 0.0
    %325 = vmatpush.xpose.msra.mxu0 0.0
    %326 = vmatpush.xpose.msra.mxu0 %v309
    %327 = vmatmul.f32.gmra.mxu0 %v307
    %v328 = vpop.f32.mrf.mxu0
    %v329 = vadd.f32 0.0, %v328
    %330 = vdwg.mxu0
    %v331 = vmul.f32 %v147, 0.35355338
    %v332 = vmul.f32 %v173, 0.35355338
    %v333 = vmul.f32 %v199, 0.35355338
    %v334 = vmul.f32 %v225, 0.35355338
    %v335 = vmul.f32 %v251, 0.35355338
    %v336 = vmul.f32 %v277, 0.35355338
    %v337 = vmul.f32 %v303, 0.35355338
    %v338 = vmul.f32 %v329, 0.35355338
    %v339 = vsel %vm124, %v331, -inf
    %340 = vmax.xlane.f32.xlu0 %v339
    %v341 = vpop.xlane.xlu0 %340
    %v342 = vsel %vm124, %v332, -inf
    %343 = vmax.xlane.f32.xlu0 %v342
    %v344 = vpop.xlane.xlu0 %343
    %v345 = vsel %vm124, %v333, -inf
    %346 = vmax.xlane.f32.xlu0 %v345
    %v347 = vpop.xlane.xlu0 %346
    %v348 = vsel %vm124, %v334, -inf
    %349 = vmax.xlane.f32.xlu0 %v348
    %v350 = vpop.xlane.xlu0 %349
    %v351 = vsel %vm124, %v335, -inf
    %352 = vmax.xlane.f32.xlu0 %v351
    %v353 = vpop.xlane.xlu0 %352
    %v354 = vsel %vm124, %v336, -inf
    %355 = vmax.xlane.f32.xlu0 %v354
    %v356 = vpop.xlane.xlu0 %355
    %v357 = vsel %vm124, %v337, -inf
    %358 = vmax.xlane.f32.xlu0 %v357
    %v359 = vpop.xlane.xlu0 %358
    %v360 = vsel %vm124, %v338, -inf
    %361 = vmax.xlane.f32.xlu0 %v360
    %v362 = vpop.xlane.xlu0 %361
    %v363 = vsub.f32 %v331, %v341
    %v364 = vsub.f32 %v332, %v344
    %v365 = vsub.f32 %v333, %v347
    %v366 = vsub.f32 %v334, %v350
    %v367 = vsub.f32 %v335, %v353
    %v368 = vsub.f32 %v336, %v356
    %v369 = vsub.f32 %v337, %v359
    %v370 = vsub.f32 %v338, %v362
    %v371 = vmul.f32 %v363, 1.442695
    %v372 = vpow.pop %v371
    %v373 = vmul.f32 %v364, 1.442695
    %v374 = vpow.pop %v373
    %v375 = vmul.f32 %v365, 1.442695
    %v376 = vpow.pop %v375
    %v377 = vmul.f32 %v366, 1.442695
    %v378 = vpow.pop %v377
    %v379 = vmul.f32 %v367, 1.442695
    %v380 = vpow.pop %v379
    %v381 = vmul.f32 %v368, 1.442695
    %v382 = vpow.pop %v381
    %v383 = vmul.f32 %v369, 1.442695
    %v384 = vpow.pop %v383
    %v385 = vmul.f32 %v370, 1.442695
    %v386 = vpow.pop %v385
    %v387 = vsel %vm124, %v372, 0.0
    %388 = vadd.xlane.f32.xlu0 %v387
    %v389 = vpop.xlane.xlu0 %388
    %v390 = vsel %vm124, %v374, 0.0
    %391 = vadd.xlane.f32.xlu0 %v390
    %v392 = vpop.xlane.xlu0 %391
    %v393 = vsel %vm124, %v376, 0.0
    %394 = vadd.xlane.f32.xlu0 %v393
    %v395 = vpop.xlane.xlu0 %394
    %v396 = vsel %vm124, %v378, 0.0
    %397 = vadd.xlane.f32.xlu0 %v396
    %v398 = vpop.xlane.xlu0 %397
    %v399 = vsel %vm124, %v380, 0.0
    %400 = vadd.xlane.f32.xlu0 %v399
    %v401 = vpop.xlane.xlu0 %400
    %v402 = vsel %vm124, %v382, 0.0
    %403 = vadd.xlane.f32.xlu0 %v402
    %v404 = vpop.xlane.xlu0 %403
    %v405 = vsel %vm124, %v384, 0.0
    %406 = vadd.xlane.f32.xlu0 %v405
    %v407 = vpop.xlane.xlu0 %406
    %v408 = vsel %vm124, %v386, 0.0
    %409 = vadd.xlane.f32.xlu0 %v408
    %v410 = vpop.xlane.xlu0 %409
    %v411 = vrcp.pop %v389
    %v412 = vrcp.pop %v392
    %v413 = vrcp.pop %v395
    %v414 = vrcp.pop %v398
    %v415 = vrcp.pop %v401
    %v416 = vrcp.pop %v404
    %v417 = vrcp.pop %v407
    %v418 = vrcp.pop %v410
    %v419 = vmul.f32 %v372, %v411
    %v420 = vmul.f32 %v374, %v412
    %v421 = vmul.f32 %v376, %v413
    %v422 = vmul.f32 %v378, %v414
    %v423 = vmul.f32 %v380, %v415
    %v424 = vmul.f32 %v382, %v416
    %v425 = vmul.f32 %v384, %v417
    %v426 = vmul.f32 %v386, %v418
    %427 = vrot.lane.b32.xlu0 %v103, 64
    %v428 = vpop.permute.xlu0 %427
    %v431 = vsel %vm124, %v419, 0
    %433 = vmatpush.msra.mxu0 0.0
    %434 = vmatpush.msra.mxu0 0.0
    %435 = vmatpush.msra.mxu0 0.0
    %436 = vmatpush.msra.mxu0 0.0
    %437 = vmatpush.msra.mxu0 0.0
    %438 = vmatpush.msra.mxu0 0.0
    %439 = vmatpush.msra.mxu0 0.0
    %440 = vmatpush.msra.mxu0 0.0
    %441 = vmatpush.msra.mxu0 0.0
    %442 = vmatpush.msra.mxu0 0.0
    %443 = vmatpush.msra.mxu0 0.0
    %444 = vmatpush.msra.mxu0 0.0
    %445 = vmatpush.msra.mxu0 0.0
    %446 = vmatpush.msra.mxu0 0.0
    %447 = vmatpush.msra.mxu0 0.0
    %448 = vmatpush.msra.mxu0 %v428
    %449 = vmatmul.f32.gmra.mxu0 %v431
    %v450 = vpop.f32.mrf.mxu0
    %v451 = vadd.f32 0.0, %v450
    %452 = vdwg.mxu0
    %453 = vrot.lane.b32.xlu0 %v111, 64
    %v454 = vpop.permute.xlu0 %453
    %v457 = vsel %vm124, %v420, 0
    %459 = vmatpush.msra.mxu0 0.0
    %460 = vmatpush.msra.mxu0 0.0
    %461 = vmatpush.msra.mxu0 0.0
    %462 = vmatpush.msra.mxu0 0.0
    %463 = vmatpush.msra.mxu0 0.0
    %464 = vmatpush.msra.mxu0 0.0
    %465 = vmatpush.msra.mxu0 0.0
    %466 = vmatpush.msra.mxu0 0.0
    %467 = vmatpush.msra.mxu0 0.0
    %468 = vmatpush.msra.mxu0 0.0
    %469 = vmatpush.msra.mxu0 0.0
    %470 = vmatpush.msra.mxu0 0.0
    %471 = vmatpush.msra.mxu0 0.0
    %472 = vmatpush.msra.mxu0 0.0
    %473 = vmatpush.msra.mxu0 0.0
    %474 = vmatpush.msra.mxu0 %v454
    %475 = vmatmul.f32.gmra.mxu0 %v457
    %v476 = vpop.f32.mrf.mxu0
    %v477 = vadd.f32 0.0, %v476
    %478 = vdwg.mxu0
    %479 = vrot.lane.b32.xlu0 %v115, 64
    %v480 = vpop.permute.xlu0 %479
    %v483 = vsel %vm124, %v421, 0
    %485 = vmatpush.msra.mxu0 0.0
    %486 = vmatpush.msra.mxu0 0.0
    %487 = vmatpush.msra.mxu0 0.0
    %488 = vmatpush.msra.mxu0 0.0
    %489 = vmatpush.msra.mxu0 0.0
    %490 = vmatpush.msra.mxu0 0.0
    %491 = vmatpush.msra.mxu0 0.0
    %492 = vmatpush.msra.mxu0 0.0
    %493 = vmatpush.msra.mxu0 0.0
    %494 = vmatpush.msra.mxu0 0.0
    %495 = vmatpush.msra.mxu0 0.0
    %496 = vmatpush.msra.mxu0 0.0
    %497 = vmatpush.msra.mxu0 0.0
    %498 = vmatpush.msra.mxu0 0.0
    %499 = vmatpush.msra.mxu0 0.0
    %500 = vmatpush.msra.mxu0 %v480
    %501 = vmatmul.f32.gmra.mxu0 %v483
    %v502 = vpop.f32.mrf.mxu0
    %v503 = vadd.f32 0.0, %v502
    %504 = vdwg.mxu0
    %505 = vrot.lane.b32.xlu0 %v119, 64
    %v506 = vpop.permute.xlu0 %505
    %v509 = vsel %vm124, %v422, 0
    %511 = vmatpush.msra.mxu0 0.0
    %512 = vmatpush.msra.mxu0 0.0
    %513 = vmatpush.msra.mxu0 0.0
    %514 = vmatpush.msra.mxu0 0.0
    %515 = vmatpush.msra.mxu0 0.0
    %516 = vmatpush.msra.mxu0 0.0
    %517 = vmatpush.msra.mxu0 0.0
    %518 = vmatpush.msra.mxu0 0.0
    %519 = vmatpush.msra.mxu0 0.0
    %520 = vmatpush.msra.mxu0 0.0
    %521 = vmatpush.msra.mxu0 0.0
    %522 = vmatpush.msra.mxu0 0.0
    %523 = vmatpush.msra.mxu0 0.0
    %524 = vmatpush.msra.mxu0 0.0
    %525 = vmatpush.msra.mxu0 0.0
    %526 = vmatpush.msra.mxu0 %v506
    %527 = vmatmul.f32.gmra.mxu0 %v509
    %v528 = vpop.f32.mrf.mxu0
    %v529 = vadd.f32 0.0, %v528
    %530 = vdwg.mxu0
    %531 = vrot.lane.b32.xlu0 %v106, 64
    %v532 = vpop.permute.xlu0 %531
    %v535 = vsel %vm124, %v423, 0
    %537 = vmatpush.msra.mxu0 0.0
    %538 = vmatpush.msra.mxu0 0.0
    %539 = vmatpush.msra.mxu0 0.0
    %540 = vmatpush.msra.mxu0 0.0
    %541 = vmatpush.msra.mxu0 0.0
    %542 = vmatpush.msra.mxu0 0.0
    %543 = vmatpush.msra.mxu0 0.0
    %544 = vmatpush.msra.mxu0 0.0
    %545 = vmatpush.msra.mxu0 0.0
    %546 = vmatpush.msra.mxu0 0.0
    %547 = vmatpush.msra.mxu0 0.0
    %548 = vmatpush.msra.mxu0 0.0
    %549 = vmatpush.msra.mxu0 0.0
    %550 = vmatpush.msra.mxu0 0.0
    %551 = vmatpush.msra.mxu0 0.0
    %552 = vmatpush.msra.mxu0 %v532
    %553 = vmatmul.f32.gmra.mxu0 %v535
    %v554 = vpop.f32.mrf.mxu0
    %v555 = vadd.f32 0.0, %v554
    %556 = vdwg.mxu0
    %557 = vrot.lane.b32.xlu0 %v113, 64
    %v558 = vpop.permute.xlu0 %557
    %v561 = vsel %vm124, %v424, 0
    %563 = vmatpush.msra.mxu0 0.0
    %564 = vmatpush.msra.mxu0 0.0
    %565 = vmatpush.msra.mxu0 0.0
    %566 = vmatpush.msra.mxu0 0.0
    %567 = vmatpush.msra.mxu0 0.0
    %568 = vmatpush.msra.mxu0 0.0
    %569 = vmatpush.msra.mxu0 0.0
    %570 = vmatpush.msra.mxu0 0.0
    %571 = vmatpush.msra.mxu0 0.0
    %572 = vmatpush.msra.mxu0 0.0
    %573 = vmatpush.msra.mxu0 0.0
    %574 = vmatpush.msra.mxu0 0.0
    %575 = vmatpush.msra.mxu0 0.0
    %576 = vmatpush.msra.mxu0 0.0
    %577 = vmatpush.msra.mxu0 0.0
    %578 = vmatpush.msra.mxu0 %v558
    %579 = vmatmul.f32.gmra.mxu0 %v561
    %v580 = vpop.f32.mrf.mxu0
    %v581 = vadd.f32 0.0, %v580
    %582 = vdwg.mxu0
    %583 = vrot.lane.b32.xlu0 %v117, 64
    %v584 = vpop.permute.xlu0 %583
    %v587 = vsel %vm124, %v425, 0
    %589 = vmatpush.msra.mxu0 0.0
    %590 = vmatpush.msra.mxu0 0.0
    %591 = vmatpush.msra.mxu0 0.0
    %592 = vmatpush.msra.mxu0 0.0
    %593 = vmatpush.msra.mxu0 0.0
    %594 = vmatpush.msra.mxu0 0.0
    %595 = vmatpush.msra.mxu0 0.0
    %596 = vmatpush.msra.mxu0 0.0
    %597 = vmatpush.msra.mxu0 0.0
    %598 = vmatpush.msra.mxu0 0.0
    %599 = vmatpush.msra.mxu0 0.0
    %600 = vmatpush.msra.mxu0 0.0
    %601 = vmatpush.msra.mxu0 0.0
    %602 = vmatpush.msra.mxu0 0.0
    %603 = vmatpush.msra.mxu0 0.0
    %604 = vmatpush.msra.mxu0 %v584
    %605 = vmatmul.f32.gmra.mxu0 %v587
    %v606 = vpop.f32.mrf.mxu0
    %v607 = vadd.f32 0.0, %v606
    %608 = vdwg.mxu0
    %609 = vrot.lane.b32.xlu0 %v121, 64
    %v610 = vpop.permute.xlu0 %609
    %v613 = vsel %vm124, %v426, 0
    %615 = vmatpush.msra.mxu0 0.0
    %616 = vmatpush.msra.mxu0 0.0
    %617 = vmatpush.msra.mxu0 0.0
    %618 = vmatpush.msra.mxu0 0.0
    %619 = vmatpush.msra.mxu0 0.0
    %620 = vmatpush.msra.mxu0 0.0
    %621 = vmatpush.msra.mxu0 0.0
    %622 = vmatpush.msra.mxu0 0.0
    %623 = vmatpush.msra.mxu0 0.0
    %624 = vmatpush.msra.mxu0 0.0
    %625 = vmatpush.msra.mxu0 0.0
    %626 = vmatpush.msra.mxu0 0.0
    %627 = vmatpush.msra.mxu0 0.0
    %628 = vmatpush.msra.mxu0 0.0
    %629 = vmatpush.msra.mxu0 0.0
    %630 = vmatpush.msra.mxu0 %v610
    %631 = vmatmul.f32.gmra.mxu0 %v613
    %v632 = vpop.f32.mrf.mxu0
    %v633 = vadd.f32 0.0, %v632
    %634 = vdwg.mxu0
    %637 = vrot.lane.b32.xlu0 %v477, 8
    %v638 = vpop.permute.xlu0 %637
    %639 = vrot.lane.b32.xlu0 %v581, 8
    %v640 = vpop.permute.xlu0 %639
    %645 = vrot.lane.b32.xlu0 %v503, 16
    %v646 = vpop.permute.xlu0 %645
    %647 = vrot.lane.b32.xlu0 %v607, 16
    %v648 = vpop.permute.xlu0 %647
    %653 = vrot.lane.b32.xlu0 %v529, 24
    %v654 = vpop.permute.xlu0 %653
    %655 = vrot.lane.b32.xlu0 %v633, 24
    %v656 = vpop.permute.xlu0 %655
    %v659 = vsel %vm124, %v451, %v638
    %v660 = vsel %vm124, %v555, %v640
    %vm661 = vcmask 130048
    %v662 = vsel %vm661, %v659, %v646
    %v663 = vsel %vm661, %v660, %v648
    %vm664 = vcmask 195584
    %v665 = vsel %vm664, %v662, %v654
    %v666 = vsel %vm664, %v663, %v656
    %v667 = vld [vmem:[#allocation7] sm:$0xff]
    %v668 = vld [vmem:[#allocation7 + $0x8] sm:$0xff]
    %v669 = vld [vmem:[#allocation7 + $0x10] sm:$0xff]
    %v670 = vld [vmem:[#allocation7 + $0x18] sm:$0xff]
    %v671 = vld [vmem:[%s4] sm:$0x1]
    %v673 = vperm.slane %v671, 0
    %v676 = vsel %vm78, %v665, 0
    %v679 = vsel %vm78, %v666, 0
    %681 = vmatpush.msra.mxu0 0.0
    %682 = vmatpush.msra.mxu0 0.0
    %683 = vmatpush.msra.mxu0 0.0
    %684 = vmatpush.msra.mxu0 0.0
    %685 = vmatpush.msra.mxu0 0.0
    %686 = vmatpush.msra.mxu0 0.0
    %687 = vmatpush.msra.mxu0 0.0
    %688 = vmatpush.msra.mxu0 0.0
    %689 = vmatpush.msra.mxu0 0.0
    %690 = vmatpush.msra.mxu0 0.0
    %691 = vmatpush.msra.mxu0 0.0
    %692 = vmatpush.msra.mxu0 0.0
    %693 = vmatpush.msra.mxu0 %v670
    %694 = vmatpush.msra.mxu0 %v669
    %695 = vmatpush.msra.mxu0 %v668
    %696 = vmatpush.msra.mxu0 %v667
    %697 = vmatmul.f32.gmra.mxu0 %v676
    %v698 = vpop.f32.mrf.mxu0
    %v699 = vadd.f32 %v673, %v698
    %700 = vmatmul.f32.gmra.mxu0 %v679
    %v701 = vpop.f32.mrf.mxu0
    %v702 = vadd.f32 %v673, %v701
    %703 = vdwg.mxu0
    %704 = vst.msk [vmem:[#allocation8] sm:$0xff] %vm78, %v699
    %705 = vst.msk [vmem:[#allocation8 + $0x8] sm:$0xff] %vm78, %v702
    // Predicated region
    $region34: #{tpu_custom_call.1} parent=1 // pred_check
      _
    $region35: #{tpu_custom_call.1} parent=1 // pred_check_branch
      %707 = sbr.rel (0) target = $region37
    $region36: #{tpu_custom_call.1} parent=1 // pred_region
      %709 = vsyncadd [#allocation4], 0
      %s710 = sshll.u32 [#allocation8], 4
      %s711 = int_to_ptr.vmem [resolvable:$true] %s710
      %s712 = sshll.u32 %s5, 4
      %s713 = int_to_ptr.hbm [resolvable:$true] %s712
      %718 = dma.vmem_to_hbm [thread:$0]  %s711, 256, %s713, [#allocation4], 128, 128, 8
    $region37: #{tpu_custom_call.1} parent=1 // pred_fallthru
      _
    // Predicated region
    $region38: #{tpu_custom_call.1} parent=1 // pred_check
      _
    $region39: #{tpu_custom_call.1} parent=1 // pred_check_branch
      %720 = sbr.rel (0) target = $region41
    $region40: #{tpu_custom_call.1} parent=1 // pred_region
      %722 = dma.done [#allocation4], 256
    $region41: #{tpu_custom_call.1} parent=1 // pred_fallthru
      _
    %723 = vsyncpa [#allocation3], 1
    %724 = vsyncpa [#allocation6], 1
    %725 = vsyncpa [#allocation4], 1

</llo_original>
